<compile_context>
chip_gen: v6e
topology: v6e:2x2x1
jax: 0.10.0
libtpu: 0.0.40
codegen_flags: <defaults>
</compile_context>

<pallas_src>
import functools

import jax
import jax.numpy as jnp
from jax.experimental import pallas as pl
from jax.experimental.pallas import tpu as pltpu


def _round_up(x, m):
    return ((x + m - 1) // m) * m


# ---------------------------------------------------------------------------
# Kernels
# ---------------------------------------------------------------------------
def _decoder_kernel_single_k(x_ref, w_ref, b_ref, o_ref):
    """Fused (x @ w.T + b) -> LeakyReLU(0.2); whole K reduction in one tile."""
    acc = jax.lax.dot_general(
        x_ref[...], w_ref[...],
        dimension_numbers=(((1,), (1,)), ((), ())),   # contract K of x with K of (N,K) weight
        preferred_element_type=jnp.float32)
    y = acc + b_ref[...]
    o_ref[...] = jnp.where(y > 0, y, 0.2 * y).astype(o_ref.dtype)


def _decoder_kernel_multi_k(x_ref, w_ref, b_ref, o_ref):
    """K-tiled variant; accumulates directly into the resident f32 output tile."""
    k = pl.program_id(2)

    @pl.when(k == 0)
    def _():
        o_ref[...] = jnp.zeros_like(o_ref)

    o_ref[...] += jax.lax.dot_general(
        x_ref[...], w_ref[...],
        dimension_numbers=(((1,), (1,)), ((), ())),
        preferred_element_type=jnp.float32)

    @pl.when(k == pl.num_programs(2) - 1)
    def _():
        y = o_ref[...] + b_ref[...]
        o_ref[...] = jnp.where(y > 0, y, 0.2 * y)


# ---------------------------------------------------------------------------
# Tiling heuristics
# ---------------------------------------------------------------------------
def _choose_tiles(M, K, N):
    # Rows: pad only to the sublane (8); use the full extent as the tile when
    # small so the last tile is never mostly padding.
    Mp = _round_up(M, 8)
    tm = Mp if Mp <= 512 else 256
    Mp = _round_up(Mp, tm)

    # Reduction: one full-extent K tile whenever it fits (no K padding, no
    # accumulation loop); otherwise the largest 256-multiple dividing padded K.
    if K <= 2048:
        tk, Kp = K, K
    else:
        Kp = _round_up(K, 256)
        tk = next(c for c in (2048, 1024, 512, 256) if Kp % c == 0)

    # Output columns: lane-dense (multiple of 128). Prefer wide tiles, but if
    # the row axis has only one block make sure the column axis has >= 2
    # blocks so both v7x TensorCores are used.
    Np = _round_up(N, 128)
    m_blocks = Mp // tm
    if Np <= 256 or (m_blocks > 1 and Np <= 1024):
        tn = Np
    else:
        tn = Np
        for cand in (1024, 512, 256, 128):
            if Np % cand == 0 and Np // cand >= 2:
                tn = cand
                break
    return tm, tk, tn, Mp, Kp, Np


# ---------------------------------------------------------------------------
# Wrapper
# ---------------------------------------------------------------------------
@functools.partial(jax.jit, static_argnames=("compute_dtype",))
def decoder_forward(user_embed, weight, bias, *, compute_dtype=jnp.bfloat16):
    """LeakyReLU(user_embed @ weight.T + bias, slope=0.2) via a Pallas kernel.

    user_embed: (B, user_embed_dim)
    weight:     (poi_embed_dim, user_embed_dim)  -- native PyTorch nn.Linear layout
    bias:       (poi_embed_dim,)
    returns:    (B, poi_embed_dim) float32
    """
    M, K = user_embed.shape
    N, K_w = weight.shape
    assert K_w == K

    tm, tk, tn, Mp, Kp, Np = _choose_tiles(M, K, N)

    # MXU operands in compute_dtype (bf16 by default, f32 accumulation inside
    # the kernel). The weight keeps its native (N, K) layout -- no transpose.
    # For the best steady-state perf, pass an already bf16 (and, if needed,
    # padded) weight so the astype/pad below are no-ops on the hot path.
    x = user_embed.astype(compute_dtype)
    w = weight.astype(compute_dtype)
    b = bias.astype(jnp.float32).reshape(1, N)

    if (Mp, Kp) != (M, K):
        x = jnp.pad(x, ((0, Mp - M), (0, Kp - K)))
    if (Np, Kp) != (N, K):
        w = jnp.pad(w, ((0, Np - N), (0, Kp - K)))
    if Np != N:
        b = jnp.pad(b, ((0, 0), (0, Np - N)))

    k_blocks = Kp // tk
    multi_k = k_blocks > 1

    # Generation-aware VMEM budget: double-buffered x / w / bias tiles plus
    # the resident f32 output tile, capped at 75% of this chip's VMEM.
    try:
        vmem_cap = int(pltpu.get_tpu_info().vmem_capacity_bytes)
    except Exception:  # non-TPU tracing / older runtimes
        vmem_cap = 64 << 20
    in_bytes = jnp.dtype(compute_dtype).itemsize
    footprint = (2 * (tm * tk + tn * tk) * in_bytes
                 + 2 * tn * 4 + 2 * tm * tn * 4)
    vmem_limit = int(min(footprint + (4 << 20), int(0.75 * vmem_cap)))
    vmem_limit = max(vmem_limit, 8 << 20)

    if multi_k:
        grid = (Mp // tm, Np // tn, k_blocks)
        in_specs = [
            pl.BlockSpec((tm, tk), lambda i, j, k: (i, k)),
            pl.BlockSpec((tn, tk), lambda i, j, k: (j, k)),
            pl.BlockSpec((1, tn), lambda i, j, k: (0, j)),
        ]
        out_spec = pl.BlockSpec((tm, tn), lambda i, j, k: (i, j))
        kernel = _decoder_kernel_multi_k
        semantics = ("parallel", "parallel", "arbitrary")
    else:
        grid = (Mp // tm, Np // tn)
        in_specs = [
            pl.BlockSpec((tm, tk), lambda i, j: (i, 0)),
            pl.BlockSpec((tn, tk), lambda i, j: (j, 0)),
            pl.BlockSpec((1, tn), lambda i, j: (0, j)),
        ]
        out_spec = pl.BlockSpec((tm, tn), lambda i, j: (i, j))
        kernel = _decoder_kernel_single_k
        semantics = ("parallel", "parallel")

    out = pl.pallas_call(
        kernel,
        out_shape=jax.ShapeDtypeStruct((Mp, Np), jnp.float32),
        grid_spec=pltpu.PrefetchScalarGridSpec(
            num_scalar_prefetch=0,
            grid=grid,
            in_specs=in_specs,
            out_specs=out_spec,
        ),
        compiler_params=pltpu.CompilerParams(
            dimension_semantics=semantics,
            vmem_limit_bytes=vmem_limit,
        ),
    )(x, w, b)

    if (Mp, Np) != (M, N):
        out = out[:M, :N]
    return out


def decoder_reference(user_embed, weight, bias):
    """Pure-JAX reference mirroring PyTorch nn.Linear + LeakyReLU(0.2)."""
    y = user_embed @ weight.T + bias
    return jnp.where(y > 0, y, 0.2 * y)


if __name__ == "__main__":
    key = jax.random.PRNGKey(0)

    def make_inputs(k, batch, in_dim, out_dim):
        k_x, k_w, k_b = jax.random.split(k, 3)
        x = jax.random.normal(k_x, (batch, in_dim), jnp.float32)
        bound = 1.0 / (in_dim ** 0.5)
        w = jax.random.uniform(k_w, (out_dim, in_dim), jnp.float32, -bound, bound)
        b = jax.random.uniform(k_b, (out_dim,), jnp.float32, -bound, bound)
        return x, w, b

    k1, k2 = jax.random.split(key)

    # 1) Spec-sized case (single-K-tile fused path), bf16 MXU operands.
    x, w, b = make_inputs(k1, batch=2, in_dim=32, out_dim=64)
    out = jax.block_until_ready(decoder_forward(x, w, b))
    ref = decoder_reference(x, w, b)
    assert out.shape == (2, 64) and out.dtype == jnp.float32
    assert jnp.allclose(out, ref, atol=3e-2, rtol=3e-2)

    # Same shapes with f32 operands (tight tolerance).
    out_f32 = jax.block_until_ready(
        decoder_forward(x, w, b, compute_dtype=jnp.float32))
    assert jnp.allclose(out_f32, ref, atol=1e-4, rtol=1e-4)

    # 2) Larger K to exercise the K-tiled accumulate-into-output path.
    x2, w2, b2 = make_inputs(k2, batch=4, in_dim=2560, out_dim=256)
    out2 = jax.block_until_ready(decoder_forward(x2, w2, b2))
    ref2 = decoder_reference(x2, w2, b2)
    assert jnp.allclose(out2, ref2, atol=5e-2, rtol=5e-2)

    print("KERNEL_OK")
</pallas_src>

<mosaic_0001>
module attributes {stable_mosaic.version = 11 : i64} {
  func.func @_decoder_kernel_single_k(%arg0: i32, %arg1: i32, %arg2: memref<8x32xbf16, #tpu.memory_space<vmem>>, %arg3: memref<128x32xbf16, #tpu.memory_space<vmem>>, %arg4: memref<1x128xf32, #tpu.memory_space<vmem>>, %arg5: memref<8x128xf32, #tpu.memory_space<vmem>>) attributes {dimension_semantics = [#tpu.dimension_semantics<parallel>, #tpu.dimension_semantics<parallel>], iteration_bounds = array<i64: 1, 1>, scalar_prefetch = 0 : i64, scratch_operands = 0 : i64, tpu.core_type = #tpu.core_type<tc>, window_params = [{transform_indices = @transform_0, window_bounds = array<i64: 8, 32>}, {transform_indices = @transform_1, window_bounds = array<i64: 128, 32>}, {transform_indices = @transform_2, window_bounds = array<i64: 1, 128>}, {transform_indices = @transform_3, window_bounds = array<i64: 8, 128>}]} {
    %c0 = arith.constant 0 : index
    %c0_0 = arith.constant 0 : index
    %0 = vector.load %arg2[%c0, %c0_0] : memref<8x32xbf16, #tpu.memory_space<vmem>>, vector<8x32xbf16>
    %c0_1 = arith.constant 0 : index
    %c0_2 = arith.constant 0 : index
    %1 = vector.load %arg3[%c0_1, %c0_2] : memref<128x32xbf16, #tpu.memory_space<vmem>>, vector<128x32xbf16>
    %cst = arith.constant dense<0.000000e+00> : vector<8x128xf32>
    %2 = tpu.matmul %0, %1, %cst {dimension_numbers = #tpu.dot_dimension_numbers<[1], [1], [0], [0], [0, 0, 1, 0], [], []>} : vector<8x32xbf16>, vector<128x32xbf16>, vector<8x128xf32> -> vector<8x128xf32>
    %c0_3 = arith.constant 0 : index
    %c0_4 = arith.constant 0 : index
    %3 = vector.load %arg4[%c0_3, %c0_4] : memref<1x128xf32, #tpu.memory_space<vmem>>, vector<1x128xf32>
    %4 = vector.broadcast %3 : vector<1x128xf32> to vector<8x128xf32>
    %5 = arith.addf %2, %4 : vector<8x128xf32>
    %cst_5 = arith.constant 0.000000e+00 : f32
    %6 = vector.broadcast %cst_5 : f32 to vector<8x128xf32>
    %7 = arith.cmpf ogt, %5, %6 : vector<8x128xf32>
    %cst_6 = arith.constant 2.000000e-01 : f32
    %8 = vector.broadcast %cst_6 : f32 to vector<8x128xf32>
    %9 = arith.mulf %8, %5 : vector<8x128xf32>
    %10 = arith.select %7, %5, %9 : vector<8x128xi1>, vector<8x128xf32>
    %c0_7 = arith.constant 0 : index
    %c0_8 = arith.constant 0 : index
    %11 = vector.load %arg5[%c0_7, %c0_8] : memref<8x128xf32, #tpu.memory_space<vmem>>, vector<8x128xf32>
    tpu.vector_store %arg5[%c0_7, %c0_8], %10 {strides = array<i32>} : memref<8x128xf32, #tpu.memory_space<vmem>>, vector<8x128xf32>,
    return
  }
  func.func @transform_0(%arg0: i32, %arg1: i32) -> (i32, i32) {
    %c0_i32 = arith.constant 0 : i32
    %c0_i32_0 = arith.constant 0 : i32
    return %arg0, %c0_i32 : i32, i32
  }
  func.func @transform_1(%arg0: i32, %arg1: i32) -> (i32, i32) {
    %c0_i32 = arith.constant 0 : i32
    %c0_i32_0 = arith.constant 0 : i32
    return %arg1, %c0_i32 : i32, i32
  }
  func.func @transform_2(%arg0: i32, %arg1: i32) -> (i32, i32) {
    %c0_i32 = arith.constant 0 : i32
    %c0_i32_0 = arith.constant 0 : i32
    return %c0_i32, %arg1 : i32, i32
  }
  func.func @transform_3(%arg0: i32, %arg1: i32) -> (i32, i32) {
    %c0_i32 = arith.constant 0 : i32
    return %arg0, %arg1 : i32, i32
  }
}

</mosaic_0001>

<llo_original>
// kernel: decoder_forward.1
$region0: #{decoder_forward.1}
  #allocation0 [shape = 'u32[]', space=smem, size = 0x4, offset = 0x4, fixed_abs, tag = 'smem constant byte address 0x4 - core index']
  #allocation1 [shape = 'u32[144,128]{1,0:T(1,128)}', space=vmem, size = 0x12000, scoped, tag = 'internal scratch']
  %s0 = inlined_call_operand.vmem [shape: bf16[8,32], index: 0, kind: input, shape index: {}]
  %s1 = inlined_call_operand.vmem [shape: bf16[128,32], index: 1, kind: input, shape index: {}]
  %s2 = inlined_call_operand.vmem [shape: f32[1,128], index: 2, kind: input, shape index: {}]
  %s3 = inlined_call_operand.vmem [shape: f32[8,128], index: 3, kind: output, shape index: {}]
  %s4 = sld [smem:[#allocation0]]
  $region22: #{decoder_forward.1} parent=0
    _
  %s6 = ssub.s32 1, %s4
  %s7 = scalar_select 0, %s6, %s4
  // Predicated region
  $region2: #{decoder_forward.1} parent=0 // pred_check
    _
  $region3: #{decoder_forward.1} parent=0 // pred_check_branch
    %9 = sbr.rel (0) target = $region5
  $region4: #{decoder_forward.1} parent=0 // pred_region
    _
  $region5: #{decoder_forward.1} parent=0 // pred_fallthru
    _
  // Predicated region
  $region6: #{decoder_forward.1} parent=0 // pred_check
    _
  $region7: #{decoder_forward.1} parent=0 // pred_check_branch
    %11 = sbr.rel (0) target = $region9
  $region8: #{decoder_forward.1} parent=0 // pred_region
    _
  $region9: #{decoder_forward.1} parent=0 // pred_fallthru
    _
  // Predicated region
  $region10: #{decoder_forward.1} parent=0 // pred_check
    _
  $region11: #{decoder_forward.1} parent=0 // pred_check_branch
    %13 = sbr.rel (0) target = $region13
  $region12: #{decoder_forward.1} parent=0 // pred_region
    _
  $region13: #{decoder_forward.1} parent=0 // pred_fallthru
    _
  %v15 = vld [vmem:[%s0] sm:$0xf]
  %v16 = vld [vmem:[%s1] sm:$0xf]
  %v17 = vld [vmem:[%s1 + $0x4] sm:$0xf]
  %v18 = vld [vmem:[%s1 + $0x8] sm:$0xf]
  %v19 = vld [vmem:[%s1 + $0xc] sm:$0xf]
  %v20 = vld [vmem:[%s1 + $0x10] sm:$0xf]
  %v21 = vld [vmem:[%s1 + $0x14] sm:$0xf]
  %v22 = vld [vmem:[%s1 + $0x18] sm:$0xf]
  %v23 = vld [vmem:[%s1 + $0x1c] sm:$0xf]
  %v24 = vld [vmem:[%s1 + $0x20] sm:$0xf]
  %v25 = vld [vmem:[%s1 + $0x24] sm:$0xf]
  %v26 = vld [vmem:[%s1 + $0x28] sm:$0xf]
  %v27 = vld [vmem:[%s1 + $0x2c] sm:$0xf]
  %v28 = vld [vmem:[%s1 + $0x30] sm:$0xf]
  %v29 = vld [vmem:[%s1 + $0x34] sm:$0xf]
  %v30 = vld [vmem:[%s1 + $0x38] sm:$0xf]
  %v31 = vld [vmem:[%s1 + $0x3c] sm:$0xf]
  %v32 = vld [vmem:[%s2] sm:$0x1]
  %v34 = vlaneseq
  %v35 = vshrl.u32 %v34, 7
  %v36 = vsub.s32 0, %v35
  %v37 = vrot.slane %v32, %v36
  %v55 = vunpack.c.l.b16 %v16
  %v56 = vunpack.c.l.b16 %v17
  %v57 = vunpack.c.l.b16 %v18
  %v58 = vunpack.c.l.b16 %v19
  %v59 = vunpack.c.l.b16 %v20
  %v60 = vunpack.c.l.b16 %v21
  %v61 = vunpack.c.l.b16 %v22
  %v62 = vunpack.c.l.b16 %v23
  %v63 = vunpack.c.l.b16 %v24
  %v64 = vunpack.c.l.b16 %v25
  %v65 = vunpack.c.l.b16 %v26
  %v66 = vunpack.c.l.b16 %v27
  %v67 = vunpack.c.l.b16 %v28
  %v68 = vunpack.c.l.b16 %v29
  %v69 = vunpack.c.l.b16 %v30
  %v70 = vunpack.c.l.b16 %v31
  %v71 = vpack.c.b16 %v56, %v55
  %v72 = vpack.c.b16 %v58, %v57
  %v73 = vpack.c.b16 %v60, %v59
  %v74 = vpack.c.b16 %v62, %v61
  %v75 = vpack.c.b16 %v64, %v63
  %v76 = vpack.c.b16 %v66, %v65
  %v77 = vpack.c.b16 %v68, %v67
  %v78 = vpack.c.b16 %v70, %v69
  %vm79 = vcmask 261120
  %v81 = vsel %vm79, %v15, 0
  %v84 = vsel %vm79, %v71, 0
  %v87 = vsel %vm79, %v72, 0
  %v90 = vsel %vm79, %v73, 0
  %v93 = vsel %vm79, %v74, 0
  %v96 = vsel %vm79, %v75, 0
  %v99 = vsel %vm79, %v76, 0
  %v102 = vsel %vm79, %v77, 0
  %v105 = vsel %vm79, %v78, 0
  %107 = vmatprep.subr.bf16.mxu0 0
  %108 = vmatpush1.bf16.xpose.msra.mxu0 %v105
  %109 = vmatprep.subr.bf16.mxu0 0
  %110 = vmatpush1.bf16.xpose.msra.mxu0 %v102
  %111 = vmatprep.subr.bf16.mxu0 0
  %112 = vmatpush1.bf16.xpose.msra.mxu0 %v99
  %113 = vmatprep.subr.bf16.mxu0 0
  %114 = vmatpush1.bf16.xpose.msra.mxu0 %v96
  %115 = vmatprep.subr.bf16.mxu0 0
  %116 = vmatpush1.bf16.xpose.msra.mxu0 %v93
  %117 = vmatprep.subr.bf16.mxu0 0
  %118 = vmatpush1.bf16.xpose.msra.mxu0 %v90
  %119 = vmatprep.subr.bf16.mxu0 0
  %120 = vmatpush1.bf16.xpose.msra.mxu0 %v87
  %121 = vmatprep.subr.bf16.mxu0 0
  %122 = vmatpush1.bf16.xpose.msra.mxu0 %v84
  %123 = vmatprep.subr.bf16.mxu0 0
  %124 = vmatpush2.bf16.xpose.msra.mxu0 0
  %125 = vmatprep.subr.bf16.mxu0 0
  %126 = vmatpush2.bf16.xpose.msra.mxu0 0
  %127 = vmatprep.subr.bf16.mxu0 0
  %128 = vmatpush2.bf16.xpose.msra.mxu0 0
  %129 = vmatprep.subr.bf16.mxu0 0
  %130 = vmatpush2.bf16.xpose.msra.mxu0 0
  %131 = vmatprep.subr.bf16.mxu0 0
  %132 = vmatpush2.bf16.xpose.msra.mxu0 0
  %133 = vmatprep.subr.bf16.mxu0 0
  %134 = vmatpush2.bf16.xpose.msra.mxu0 0
  %135 = vmatprep.subr.bf16.mxu0 0
  %136 = vmatpush2.bf16.xpose.msra.mxu0 0
  %137 = vmatprep.subr.bf16.mxu0 0
  %138 = vmatpush2.bf16.xpose.msra.mxu0 0
  %139 = vmatprep.mubr.bf16.mxu0 0
  %140 = vmatmul.mubr.bf16.gmra.mxu0 %v81
  %v141 = vpop.f32.mrf.mxu0
  %v142 = vadd.f32 %v37, %v141
  %v143 = vpop.f32.mrf.mxu0
  %v144 = vpop.f32.mrf.mxu0
  %v145 = vpop.f32.mrf.mxu0
  %146 = vdwg.mxu0
  %vm147 = vcmp.gt.f32.partialorder %v142, 0.0
  %v148 = vmul.f32 %v142, 0.2
  %v149 = vsel %vm147, %v142, %v148
  %150 = vst [vmem:[%s3] sm:$0xff] %v149
  // Predicated region
  $region14: #{decoder_forward.1} parent=0 // pred_check
    _
  $region15: #{decoder_forward.1} parent=0 // pred_check_branch
    %152 = sbr.rel (0) target = $region17
  $region16: #{decoder_forward.1} parent=0 // pred_region
    _
  $region17: #{decoder_forward.1} parent=0 // pred_fallthru
    _
  // Predicated region
  $region18: #{decoder_forward.1} parent=0 // pred_check
    _
  $region19: #{decoder_forward.1} parent=0 // pred_check_branch
    %154 = sbr.rel (0) target = $region21
  $region20: #{decoder_forward.1} parent=0 // pred_region
    _
  $region21: #{decoder_forward.1} parent=0 // pred_fallthru
    _

</llo_original>
